<compile_context>
chip_gen: v7x
topology: tpu7x:2x2x1
jax: 0.10.0
libtpu: 0.0.40
codegen_flags: <defaults>
</compile_context>

<pallas_src>
import functools

import jax
import jax.numpy as jnp
from jax.experimental import pallas as pl
from jax.experimental.pallas import tpu as pltpu


# ----------------------------- fused kernel ---------------------------------

def _fused_mlp_kernel(*refs, activations):
    # refs = (x_ref, w0, b0, w1, b1, ..., wN, bN, o_ref)
    x_ref = refs[0]
    o_ref = refs[-1]
    param_refs = refs[1:-1]

    h = x_ref[...]
    for li, act in enumerate(activations):
        w = param_refs[2 * li][...]        # (Din_l_pad, Dout_l_pad), VMEM-resident
        b = param_refs[2 * li + 1][...]    # (1, Dout_l_pad)
        y = jnp.dot(h, w, preferred_element_type=jnp.float32) + b
        if act == "relu":
            y = jnp.maximum(y, 0.0)
        elif act == "sigmoid":
            y = jax.nn.sigmoid(y)          # exp + reciprocal -> EUP slot
        elif act == "none":
            pass
        else:
            raise ValueError(act)
        h = y
    o_ref[...] = h.astype(o_ref.dtype)


def _round_up(x, m):
    return ((x + m - 1) // m) * m


def autoencoder_forward(x, layers, *, tb_target=256):
    """Single fused Pallas call for the whole MLP.

    x:       [B, Din] activations
    layers:  list of (w:[Din_l, Dout_l], b:[Dout_l], activation:str)
    """
    B, Din = x.shape
    Dout_final = layers[-1][0].shape[1]
    activations = tuple(act for _, _, act in layers)

    # ---- batch tile selection -------------------------------------------
    # Large tiles amortize the ~600-cycle per-grid-step overhead and fill the
    # MXU's M dimension; for small batches, aim for >=2 grid steps so both
    # TensorCores (v7x) get work.  Always a multiple of 8 (sublanes).
    if B >= 2 * tb_target:
        tb = tb_target
    elif B > 8:
        tb = max(8, _round_up(pl.cdiv(B, 2), 8))
    else:
        tb = _round_up(max(B, 1), 8)
    Bp = _round_up(B, tb)

    # ---- feature padding to 128 lanes (lane-dense layout) ------------------
    Din_pad = _round_up(Din, 128)
    Dout_final_pad = _round_up(Dout_final, 128)

    # Zero-pad ragged batch and feature dims (padding is sliced off after).
    if Bp != B or Din_pad != Din:
        x_in = jnp.zeros((Bp, Din_pad), x.dtype).at[:B, :Din].set(x)
    else:
        x_in = x

    # ---- specs ------------------------------------------------------------
    in_specs = [pl.BlockSpec((tb, Din_pad), lambda i: (i, 0))]
    param_args = []
    for (w, b, _act) in layers:
        din_l, dout_l = w.shape
        din_p, dout_p = _round_up(din_l, 128), _round_up(dout_l, 128)
        if (din_p, dout_p) != (din_l, dout_l):
            w_p = jnp.zeros((din_p, dout_p), w.dtype).at[:din_l, :dout_l].set(w)
            b_p = jnp.zeros((1, dout_p), b.dtype).at[0, :dout_l].set(b)
        else:
            w_p = w
            b_p = b.reshape(1, dout_l)
        in_specs.append(pl.BlockSpec((din_p, dout_p), lambda i: (0, 0)))
        in_specs.append(pl.BlockSpec((1, dout_p), lambda i: (0, 0)))
        param_args.append(w_p)
        param_args.append(b_p)

    kernel = functools.partial(_fused_mlp_kernel, activations=activations)

    out = pl.pallas_call(
        kernel,
        out_shape=jax.ShapeDtypeStruct((Bp, Dout_final_pad), x.dtype),
        grid=(Bp // tb,),
        in_specs=in_specs,
        out_specs=pl.BlockSpec((tb, Dout_final_pad), lambda i: (i, 0)),
        compiler_params=pltpu.CompilerParams(
            dimension_semantics=("parallel",),
        ),
    )(x_in, *param_args)

    if Bp != B or Dout_final_pad != Dout_final:
        out = out[:B, :Dout_final]
    return out


# ----------------------- parameter construction -----------------------------

def init_linear_params(key, fan_in, fan_out):
    """PyTorch-Linear-style init: U(-1/sqrt(fan_in), 1/sqrt(fan_in))."""
    kw, kb = jax.random.split(key)
    bound = 1.0 / jnp.sqrt(jnp.float32(fan_in))
    w = jax.random.uniform(kw, (fan_in, fan_out), jnp.float32, -bound, bound)
    b = jax.random.uniform(kb, (fan_out,), jnp.float32, -bound, bound)
    return w, b


def build_autoencoder_params(key, input_size, enc_sizes, dec_sizes):
    assert enc_sizes[-1] == dec_sizes[0], (
        "Last encoder and first decoder layer sizes must be the same!"
    )
    layers = []  # list of (w, b, activation)
    # encoder: Linear -> ReLU per hidden size
    prev = input_size
    for h in enc_sizes:
        key, sub = jax.random.split(key)
        w, b = init_linear_params(sub, prev, h)
        layers.append((w, b, "relu"))
        prev = h
    # decoder: Linear -> ReLU for sizes[1:], then Linear(input_size) -> Sigmoid
    for h in dec_sizes[1:]:
        key, sub = jax.random.split(key)
        w, b = init_linear_params(sub, prev, h)
        layers.append((w, b, "relu"))
        prev = h
    key, sub = jax.random.split(key)
    w, b = init_linear_params(sub, prev, input_size)
    layers.append((w, b, "sigmoid"))
    return layers


def autoencoder_forward_ref(x, layers):
    """Plain-JAX reference for correctness checking."""
    for w, b, act in layers:
        x = x @ w + b
        if act == "relu":
            x = jnp.maximum(x, 0.0)
        elif act == "sigmoid":
            x = jax.nn.sigmoid(x)
    return x


# TODO(synk): the PyTorch module's fit() training loop (optimizer / DataLoader)
# is host-side training code and is not translated to a Pallas kernel.

if __name__ == "__main__":
    # Small shapes consistent with the module's forward:
    #   Autoencoder(input_size=64, encoder=[32, 16], decoder=[16, 32])
    # Batch of 64 -> two 32-row grid steps (exercises tiling + megacore path).
    batch = 64
    input_size = 64
    encoder_hidden_layer_sizes = [32, 16]
    decoder_hidden_layer_sizes = [16, 32]

    root = jax.random.PRNGKey(0)
    kx, kp = jax.random.split(root)
    x = jax.random.uniform(kx, (batch, input_size), jnp.float32)

    layers = build_autoencoder_params(
        kp, input_size, encoder_hidden_layer_sizes, decoder_hidden_layer_sizes
    )

    out = autoencoder_forward(x, layers)
    out = jax.block_until_ready(out)

    ref = autoencoder_forward_ref(x, layers)
    assert out.shape == (batch, input_size)
    assert jnp.allclose(out, ref, atol=1e-5, rtol=1e-5)

    print("KERNEL_OK")
</pallas_src>

<mosaic_0001>
module attributes {stable_mosaic.version = 11 : i64} {
  func.func @_fused_mlp_kernel(%arg0: i32, %arg1: memref<32x128xf32, #tpu.memory_space<vmem>>, %arg2: memref<128x128xf32, #tpu.memory_space<vmem>>, %arg3: memref<1x128xf32, #tpu.memory_space<vmem>>, %arg4: memref<128x128xf32, #tpu.memory_space<vmem>>, %arg5: memref<1x128xf32, #tpu.memory_space<vmem>>, %arg6: memref<128x128xf32, #tpu.memory_space<vmem>>, %arg7: memref<1x128xf32, #tpu.memory_space<vmem>>, %arg8: memref<128x128xf32, #tpu.memory_space<vmem>>, %arg9: memref<1x128xf32, #tpu.memory_space<vmem>>, %arg10: memref<32x128xf32, #tpu.memory_space<vmem>>) attributes {dimension_semantics = [#tpu.dimension_semantics<parallel>], iteration_bounds = array<i64: 2>, scalar_prefetch = 0 : i64, scratch_operands = 0 : i64, tpu.core_type = #tpu.core_type<tc>, window_params = [{transform_indices = @transform_0, window_bounds = array<i64: 32, 128>}, {pipeline_mode = #tpu.pipeline_mode<synchronous>, transform_indices = @transform_1, window_bounds = array<i64: 128, 128>}, {pipeline_mode = #tpu.pipeline_mode<synchronous>, transform_indices = @transform_2, window_bounds = array<i64: 1, 128>}, {pipeline_mode = #tpu.pipeline_mode<synchronous>, transform_indices = @transform_3, window_bounds = array<i64: 128, 128>}, {pipeline_mode = #tpu.pipeline_mode<synchronous>, transform_indices = @transform_4, window_bounds = array<i64: 1, 128>}, {pipeline_mode = #tpu.pipeline_mode<synchronous>, transform_indices = @transform_5, window_bounds = array<i64: 128, 128>}, {pipeline_mode = #tpu.pipeline_mode<synchronous>, transform_indices = @transform_6, window_bounds = array<i64: 1, 128>}, {pipeline_mode = #tpu.pipeline_mode<synchronous>, transform_indices = @transform_7, window_bounds = array<i64: 128, 128>}, {pipeline_mode = #tpu.pipeline_mode<synchronous>, transform_indices = @transform_8, window_bounds = array<i64: 1, 128>}, {transform_indices = @transform_9, window_bounds = array<i64: 32, 128>}]} {
    %c0 = arith.constant 0 : index
    %c0_0 = arith.constant 0 : index
    %0 = vector.load %arg1[%c0, %c0_0] : memref<32x128xf32, #tpu.memory_space<vmem>>, vector<32x128xf32>
    %c0_1 = arith.constant 0 : index
    %c0_2 = arith.constant 0 : index
    %1 = vector.load %arg2[%c0_1, %c0_2] : memref<128x128xf32, #tpu.memory_space<vmem>>, vector<128x128xf32>
    %c0_3 = arith.constant 0 : index
    %c0_4 = arith.constant 0 : index
    %2 = vector.load %arg3[%c0_3, %c0_4] : memref<1x128xf32, #tpu.memory_space<vmem>>, vector<1x128xf32>
    %cst = arith.constant dense<0.000000e+00> : vector<32x128xf32>
    %3 = tpu.matmul %0, %1, %cst {dimension_numbers = #tpu.dot_dimension_numbers<[1], [0], [0], [1], [0, 0, 1, 1], [], []>} : vector<32x128xf32>, vector<128x128xf32>, vector<32x128xf32> -> vector<32x128xf32>
    %4 = vector.broadcast %2 : vector<1x128xf32> to vector<32x128xf32>
    %5 = arith.addf %3, %4 : vector<32x128xf32>
    %cst_5 = arith.constant 0.000000e+00 : f32
    %6 = vector.broadcast %cst_5 : f32 to vector<32x128xf32>
    %7 = arith.maximumf %5, %6 : vector<32x128xf32>
    %c0_6 = arith.constant 0 : index
    %c0_7 = arith.constant 0 : index
    %8 = vector.load %arg4[%c0_6, %c0_7] : memref<128x128xf32, #tpu.memory_space<vmem>>, vector<128x128xf32>
    %c0_8 = arith.constant 0 : index
    %c0_9 = arith.constant 0 : index
    %9 = vector.load %arg5[%c0_8, %c0_9] : memref<1x128xf32, #tpu.memory_space<vmem>>, vector<1x128xf32>
    %cst_10 = arith.constant dense<0.000000e+00> : vector<32x128xf32>
    %10 = tpu.matmul %7, %8, %cst_10 {dimension_numbers = #tpu.dot_dimension_numbers<[1], [0], [0], [1], [0, 0, 1, 1], [], []>} : vector<32x128xf32>, vector<128x128xf32>, vector<32x128xf32> -> vector<32x128xf32>
    %11 = vector.broadcast %9 : vector<1x128xf32> to vector<32x128xf32>
    %12 = arith.addf %10, %11 : vector<32x128xf32>
    %cst_11 = arith.constant 0.000000e+00 : f32
    %13 = vector.broadcast %cst_11 : f32 to vector<32x128xf32>
    %14 = arith.maximumf %12, %13 : vector<32x128xf32>
    %c0_12 = arith.constant 0 : index
    %c0_13 = arith.constant 0 : index
    %15 = vector.load %arg6[%c0_12, %c0_13] : memref<128x128xf32, #tpu.memory_space<vmem>>, vector<128x128xf32>
    %c0_14 = arith.constant 0 : index
    %c0_15 = arith.constant 0 : index
    %16 = vector.load %arg7[%c0_14, %c0_15] : memref<1x128xf32, #tpu.memory_space<vmem>>, vector<1x128xf32>
    %cst_16 = arith.constant dense<0.000000e+00> : vector<32x128xf32>
    %17 = tpu.matmul %14, %15, %cst_16 {dimension_numbers = #tpu.dot_dimension_numbers<[1], [0], [0], [1], [0, 0, 1, 1], [], []>} : vector<32x128xf32>, vector<128x128xf32>, vector<32x128xf32> -> vector<32x128xf32>
    %18 = vector.broadcast %16 : vector<1x128xf32> to vector<32x128xf32>
    %19 = arith.addf %17, %18 : vector<32x128xf32>
    %cst_17 = arith.constant 0.000000e+00 : f32
    %20 = vector.broadcast %cst_17 : f32 to vector<32x128xf32>
    %21 = arith.maximumf %19, %20 : vector<32x128xf32>
    %c0_18 = arith.constant 0 : index
    %c0_19 = arith.constant 0 : index
    %22 = vector.load %arg8[%c0_18, %c0_19] : memref<128x128xf32, #tpu.memory_space<vmem>>, vector<128x128xf32>
    %c0_20 = arith.constant 0 : index
    %c0_21 = arith.constant 0 : index
    %23 = vector.load %arg9[%c0_20, %c0_21] : memref<1x128xf32, #tpu.memory_space<vmem>>, vector<1x128xf32>
    %cst_22 = arith.constant dense<0.000000e+00> : vector<32x128xf32>
    %24 = tpu.matmul %21, %22, %cst_22 {dimension_numbers = #tpu.dot_dimension_numbers<[1], [0], [0], [1], [0, 0, 1, 1], [], []>} : vector<32x128xf32>, vector<128x128xf32>, vector<32x128xf32> -> vector<32x128xf32>
    %25 = vector.broadcast %23 : vector<1x128xf32> to vector<32x128xf32>
    %26 = arith.addf %24, %25 : vector<32x128xf32>
    %27 = arith.negf %26 : vector<32x128xf32>
    %28 = math.exp %27 : vector<32x128xf32>
    %cst_23 = arith.constant 1.000000e+00 : f32
    %29 = vector.broadcast %cst_23 : f32 to vector<32x128xf32>
    %30 = arith.addf %29, %28 : vector<32x128xf32>
    %31 = arith.divf %29, %30 : vector<32x128xf32>
    %c0_24 = arith.constant 0 : index
    %c0_25 = arith.constant 0 : index
    %32 = vector.load %arg10[%c0_24, %c0_25] : memref<32x128xf32, #tpu.memory_space<vmem>>, vector<32x128xf32>
    tpu.vector_store %arg10[%c0_24, %c0_25], %31 {strides = array<i32>} : memref<32x128xf32, #tpu.memory_space<vmem>>, vector<32x128xf32>,
    return
  }
  func.func @transform_0(%arg0: i32) -> (i32, i32) {
    %c0_i32 = arith.constant 0 : i32
    %c0_i32_0 = arith.constant 0 : i32
    return %arg0, %c0_i32 : i32, i32
  }
  func.func @transform_1(%arg0: i32) -> (i32, i32) {
    %c0_i32 = arith.constant 0 : i32
    %c0_i32_0 = arith.constant 0 : i32
    %c0_i32_1 = arith.constant 0 : i32
    return %c0_i32, %c0_i32_0 : i32, i32
  }
  func.func @transform_2(%arg0: i32) -> (i32, i32) {
    %c0_i32 = arith.constant 0 : i32
    %c0_i32_0 = arith.constant 0 : i32
    %c0_i32_1 = arith.constant 0 : i32
    return %c0_i32, %c0_i32_0 : i32, i32
  }
  func.func @transform_3(%arg0: i32) -> (i32, i32) {
    %c0_i32 = arith.constant 0 : i32
    %c0_i32_0 = arith.constant 0 : i32
    %c0_i32_1 = arith.constant 0 : i32
    return %c0_i32, %c0_i32_0 : i32, i32
  }
  func.func @transform_4(%arg0: i32) -> (i32, i32) {
    %c0_i32 = arith.constant 0 : i32
    %c0_i32_0 = arith.constant 0 : i32
    %c0_i32_1 = arith.constant 0 : i32
    return %c0_i32, %c0_i32_0 : i32, i32
  }
  func.func @transform_5(%arg0: i32) -> (i32, i32) {
    %c0_i32 = arith.constant 0 : i32
    %c0_i32_0 = arith.constant 0 : i32
    %c0_i32_1 = arith.constant 0 : i32
    return %c0_i32, %c0_i32_0 : i32, i32
  }
  func.func @transform_6(%arg0: i32) -> (i32, i32) {
    %c0_i32 = arith.constant 0 : i32
    %c0_i32_0 = arith.constant 0 : i32
    %c0_i32_1 = arith.constant 0 : i32
    return %c0_i32, %c0_i32_0 : i32, i32
  }
  func.func @transform_7(%arg0: i32) -> (i32, i32) {
    %c0_i32 = arith.constant 0 : i32
    %c0_i32_0 = arith.constant 0 : i32
    %c0_i32_1 = arith.constant 0 : i32
    return %c0_i32, %c0_i32_0 : i32, i32
  }
  func.func @transform_8(%arg0: i32) -> (i32, i32) {
    %c0_i32 = arith.constant 0 : i32
    %c0_i32_0 = arith.constant 0 : i32
    %c0_i32_1 = arith.constant 0 : i32
    return %c0_i32, %c0_i32_0 : i32, i32
  }
  func.func @transform_9(%arg0: i32) -> (i32, i32) {
    %c0_i32 = arith.constant 0 : i32
    %c0_i32_0 = arith.constant 0 : i32
    return %arg0, %c0_i32 : i32, i32
  }
}

</mosaic_0001>

<llo_original>
// kernel: tpu_custom_call.1
$region0: #{tpu_custom_call.1}
  #allocation0 [shape = 'u32[]', space=smem, size = 0x4, offset = 0x4, fixed_abs, tag = 'smem constant byte address 0x4 - core index']
  #allocation1 [shape = 'u32[144,128]{1,0:T(1,128)}', space=vmem, size = 0x12000, scoped, tag = 'internal scratch']
  %s0 = inlined_call_operand.hbm [shape: f32[64,128], index: 0, kind: input, shape index: {}]
  %s1 = inlined_call_operand.hbm [shape: f32[128,128], index: 1, kind: input, shape index: {}]
  %s2 = inlined_call_operand.vmem [shape: f32[1,128], index: 2, kind: input, shape index: {}]
  %s3 = inlined_call_operand.hbm [shape: f32[128,128], index: 3, kind: input, shape index: {}]
  %s4 = inlined_call_operand.vmem [shape: f32[1,128], index: 4, kind: input, shape index: {}]
  %s5 = inlined_call_operand.hbm [shape: f32[128,128], index: 5, kind: input, shape index: {}]
  %s6 = inlined_call_operand.vmem [shape: f32[1,128], index: 6, kind: input, shape index: {}]
  %s7 = inlined_call_operand.hbm [shape: f32[128,128], index: 7, kind: input, shape index: {}]
  %s8 = inlined_call_operand.vmem [shape: f32[1,128], index: 8, kind: input, shape index: {}]
  %s9 = inlined_call_operand.hbm [shape: f32[64,128], index: 9, kind: output, shape index: {}]
  %s10 = sld [smem:[#allocation0]]
  $region89: #{tpu_custom_call.1} parent=0
    _
  %s12 = ssub.s32 1, %s10
  %s13 = scalar_select 0, %s12, %s10
  $region1: #{tpu_custom_call.1} parent=0
    #allocation2 [shape = 'u8[32768]{0}', space=vmem, size = 0x8000, scoped, tag = 'input window, operand 0']
    #allocation3 [shape = 's32[2]{0}', space=sflag, size = 0x8, scoped, tag = 'scoped memory for tpu_custom_call.1']
    #allocation4 [shape = 's32[2]{0}', space=sflag, size = 0x8, scoped, tag = 'scoped memory for tpu_custom_call.1']
    #allocation5 [shape = 'u8[65536]{0}', space=vmem, size = 0x10000, scoped, tag = 'input window, operand 1, single buffered']
    #allocation6 [shape = 's32[1]{0}', space=sflag, size = 0x4, scoped, tag = 'scoped memory for tpu_custom_call.1']
    #allocation7 [shape = 'u8[65536]{0}', space=vmem, size = 0x10000, scoped, tag = 'input window, operand 3, single buffered']
    #allocation8 [shape = 'u8[65536]{0}', space=vmem, size = 0x10000, scoped, tag = 'input window, operand 5, single buffered']
    #allocation9 [shape = 's32[1]{0}', space=sflag, size = 0x4, scoped, tag = 'scoped memory for tpu_custom_call.1']
    #allocation10 [shape = 'u8[65536]{0}', space=vmem, size = 0x10000, scoped, tag = 'input window, operand 7, single buffered']
    #allocation11 [shape = 'u8[32768]{0}', space=vmem, size = 0x8000, scoped, tag = 'output window, operand 0']
    %14 = vsyncpa [#allocation3], 0
    %s15 = scalar_lea.sflag [#allocation3], 1
    %16 = vsyncpa %s15, 0
    %17 = vsyncpa [#allocation6], 0
    %18 = vsyncpa [#allocation9], 0
    %19 = vsyncpa [#allocation4], 0
    %s20 = scalar_lea.sflag [#allocation4], 1
    %21 = vsyncpa %s20, 0
    loop: start=0, step=1, limit=4
    $region2: #{tpu_custom_call.1} parent=1 // loop_pre_header
      _
    $region3: #{tpu_custom_call.1} parent=1 // loop_header
      %s23 = sphi 0, %s27
      %p24 = scmp.ge.s32.totalorder %s23, 4
      %s33 = sphi 0, %s35
      %s36 = sphi 0, %s33
      %s37 = sphi 0, %s36
      %s53 = sphi 0, %s37
      %s57 = sphi 0, %s57
      %s59 = sphi 0, %s57
      %s60 = sphi 0, %s59
      %s74 = sphi 0, %s60
      %s78 = sphi 0, %s78
      %s80 = sphi 0, %s78
      %s81 = sphi 0, %s80
      %s95 = sphi 0, %s81
      %s99 = sphi 0, %s99
      %s101 = sphi 0, %s99
      %s102 = sphi 0, %s101
      %s116 = sphi 0, %s102
      %s120 = sphi 0, %s120
      %s122 = sphi 0, %s120
      %s123 = sphi 0, %s122
      %s137 = sphi 0, %s123
      %s141 = sphi 0, %s141
      %s143 = sphi 0, %s141
      %s144 = sphi 0, %s143
      %s158 = sphi 0, %s144
      %s162 = sphi 0, %s162
      %s164 = sphi 0, %s162
      %s165 = sphi 0, %s164
      %s179 = sphi 0, %s165
      %s183 = sphi 0, %s183
      %s185 = sphi 0, %s183
      %s186 = sphi 0, %s185
      %s200 = sphi 0, %s186
      %s204 = sphi 0, %s204
      %s206 = sphi 0, %s204
      %s207 = sphi 0, %s206
      %s221 = sphi 0, %s207
      %s227 = sphi 0, %s229
      %s230 = sphi 0, %s227
      %s231 = sphi 0, %s230
      %s247 = sphi 0, %s231
    $region4: #{tpu_custom_call.1} parent=1 // loop_header_branch
      %26 = sbr.rel (%p24) target = $region8
    $region5: #{tpu_custom_call.1} parent=1 // loop_body
      %s28 = ssub.s32 %s23, 1
      %s29 = ssub.s32 %s23, 2
      %s30 = sadd.s32 %s23, 1
      %s31 = ssub.s32 %s23, %s30
      %p32 = scmp.eq.s32.totalorder %s31, 0
      %s34 = sadd.s32 %s33, 1
      %s35 = scalar_select %p32, %s33, %s34
      %p38 = pneg %p32
      %p39 = scmp.eq.s32.totalorder %s23, 1
      %p40 = por %p38, %p39
      %p41 = scmp.ne.s32.totalorder %s33, %s36
      %p42 = scmp.eq.s32.totalorder %s23, 0
      %p43 = por %p41, %p42
      %p44 = scmp.ne.s32.totalorder %s33, %s36
      %p45 = scmp.eq.s32.totalorder %s28, 1
      %p46 = por %p44, %p45
      %p47 = scmp.ne.s32.totalorder %s36, %s37
      %p48 = scmp.eq.s32.totalorder %s28, 0
      %p49 = por %p47, %p48
      %p50 = scmp.ne.s32.totalorder %s36, %s37
      %p51 = scmp.eq.s32.totalorder %s29, 1
      %p52 = por %p50, %p51
      %p54 = scmp.ne.s32.totalorder %s37, %s53
      %p55 = scmp.eq.s32.totalorder %s29, 0
      %p56 = por %p54, %p55
      %s58 = sadd.s32 %s57, 1
      %p61 = scmp.eq.s32.totalorder %s23, 1
      %p62 = scmp.ne.s32.totalorder %s57, %s59
      %p63 = scmp.eq.s32.totalorder %s23, 0
      %p64 = por %p62, %p63
      %p65 = scmp.ne.s32.totalorder %s57, %s59
      %p66 = scmp.eq.s32.totalorder %s28, 1
      %p67 = por %p65, %p66
      %p68 = scmp.ne.s32.totalorder %s59, %s60
      %p69 = scmp.eq.s32.totalorder %s28, 0
      %p70 = por %p68, %p69
      %p71 = scmp.ne.s32.totalorder %s59, %s60
      %p72 = scmp.eq.s32.totalorder %s29, 1
      %p73 = por %p71, %p72
      %p75 = scmp.ne.s32.totalorder %s60, %s74
      %p76 = scmp.eq.s32.totalorder %s29, 0
      %p77 = por %p75, %p76
      %s79 = sadd.s32 %s78, 1
      %p82 = scmp.eq.s32.totalorder %s23, 1
      %p83 = scmp.ne.s32.totalorder %s78, %s80
      %p84 = scmp.eq.s32.totalorder %s23, 0
      %p85 = por %p83, %p84
      %p86 = scmp.ne.s32.totalorder %s78, %s80
      %p87 = scmp.eq.s32.totalorder %s28, 1
      %p88 = por %p86, %p87
      %p89 = scmp.ne.s32.totalorder %s80, %s81
      %p90 = scmp.eq.s32.totalorder %s28, 0
      %p91 = por %p89, %p90
      %p92 = scmp.ne.s32.totalorder %s80, %s81
      %p93 = scmp.eq.s32.totalorder %s29, 1
      %p94 = por %p92, %p93
      %p96 = scmp.ne.s32.totalorder %s81, %s95
      %p97 = scmp.eq.s32.totalorder %s29, 0
      %p98 = por %p96, %p97
      %s100 = sadd.s32 %s99, 1
      %p103 = scmp.eq.s32.totalorder %s23, 1
      %p104 = scmp.ne.s32.totalorder %s99, %s101
      %p105 = scmp.eq.s32.totalorder %s23, 0
      %p106 = por %p104, %p105
      %p107 = scmp.ne.s32.totalorder %s99, %s101
      %p108 = scmp.eq.s32.totalorder %s28, 1
      %p109 = por %p107, %p108
      %p110 = scmp.ne.s32.totalorder %s101, %s102
      %p111 = scmp.eq.s32.totalorder %s28, 0
      %p112 = por %p110, %p111
      %p113 = scmp.ne.s32.totalorder %s101, %s102
      %p114 = scmp.eq.s32.totalorder %s29, 1
      %p115 = por %p113, %p114
      %p117 = scmp.ne.s32.totalorder %s102, %s116
      %p118 = scmp.eq.s32.totalorder %s29, 0
      %p119 = por %p117, %p118
      %s121 = sadd.s32 %s120, 1
      %p124 = scmp.eq.s32.totalorder %s23, 1
      %p125 = scmp.ne.s32.totalorder %s120, %s122
      %p126 = scmp.eq.s32.totalorder %s23, 0
      %p127 = por %p125, %p126
      %p128 = scmp.ne.s32.totalorder %s120, %s122
      %p129 = scmp.eq.s32.totalorder %s28, 1
      %p130 = por %p128, %p129
      %p131 = scmp.ne.s32.totalorder %s122, %s123
      %p132 = scmp.eq.s32.totalorder %s28, 0
      %p133 = por %p131, %p132
      %p134 = scmp.ne.s32.totalorder %s122, %s123
      %p135 = scmp.eq.s32.totalorder %s29, 1
      %p136 = por %p134, %p135
      %p138 = scmp.ne.s32.totalorder %s123, %s137
      %p139 = scmp.eq.s32.totalorder %s29, 0
      %p140 = por %p138, %p139
      %s142 = sadd.s32 %s141, 1
      %p145 = scmp.eq.s32.totalorder %s23, 1
      %p146 = scmp.ne.s32.totalorder %s141, %s143
      %p147 = scmp.eq.s32.totalorder %s23, 0
      %p148 = por %p146, %p147
      %p149 = scmp.ne.s32.totalorder %s141, %s143
      %p150 = scmp.eq.s32.totalorder %s28, 1
      %p151 = por %p149, %p150
      %p152 = scmp.ne.s32.totalorder %s143, %s144
      %p153 = scmp.eq.s32.totalorder %s28, 0
      %p154 = por %p152, %p153
      %p155 = scmp.ne.s32.totalorder %s143, %s144
      %p156 = scmp.eq.s32.totalorder %s29, 1
      %p157 = por %p155, %p156
      %p159 = scmp.ne.s32.totalorder %s144, %s158
      %p160 = scmp.eq.s32.totalorder %s29, 0
      %p161 = por %p159, %p160
      %s163 = sadd.s32 %s162, 1
      %p166 = scmp.eq.s32.totalorder %s23, 1
      %p167 = scmp.ne.s32.totalorder %s162, %s164
      %p168 = scmp.eq.s32.totalorder %s23, 0
      %p169 = por %p167, %p168
      %p170 = scmp.ne.s32.totalorder %s162, %s164
      %p171 = scmp.eq.s32.totalorder %s28, 1
      %p172 = por %p170, %p171
      %p173 = scmp.ne.s32.totalorder %s164, %s165
      %p174 = scmp.eq.s32.totalorder %s28, 0
      %p175 = por %p173, %p174
      %p176 = scmp.ne.s32.totalorder %s164, %s165
      %p177 = scmp.eq.s32.totalorder %s29, 1
      %p178 = por %p176, %p177
      %p180 = scmp.ne.s32.totalorder %s165, %s179
      %p181 = scmp.eq.s32.totalorder %s29, 0
      %p182 = por %p180, %p181
      %s184 = sadd.s32 %s183, 1
      %p187 = scmp.eq.s32.totalorder %s23, 1
      %p188 = scmp.ne.s32.totalorder %s183, %s185
      %p189 = scmp.eq.s32.totalorder %s23, 0
      %p190 = por %p188, %p189
      %p191 = scmp.ne.s32.totalorder %s183, %s185
      %p192 = scmp.eq.s32.totalorder %s28, 1
      %p193 = por %p191, %p192
      %p194 = scmp.ne.s32.totalorder %s185, %s186
      %p195 = scmp.eq.s32.totalorder %s28, 0
      %p196 = por %p194, %p195
      %p197 = scmp.ne.s32.totalorder %s185, %s186
      %p198 = scmp.eq.s32.totalorder %s29, 1
      %p199 = por %p197, %p198
      %p201 = scmp.ne.s32.totalorder %s186, %s200
      %p202 = scmp.eq.s32.totalorder %s29, 0
      %p203 = por %p201, %p202
      %s205 = sadd.s32 %s204, 1
      %p208 = scmp.eq.s32.totalorder %s23, 1
      %p209 = scmp.ne.s32.totalorder %s204, %s206
      %p210 = scmp.eq.s32.totalorder %s23, 0
      %p211 = por %p209, %p210
      %p212 = scmp.ne.s32.totalorder %s204, %s206
      %p213 = scmp.eq.s32.totalorder %s28, 1
      %p214 = por %p212, %p213
      %p215 = scmp.ne.s32.totalorder %s206, %s207
      %p216 = scmp.eq.s32.totalorder %s28, 0
      %p217 = por %p215, %p216
      %p218 = scmp.ne.s32.totalorder %s206, %s207
      %p219 = scmp.eq.s32.totalorder %s29, 1
      %p220 = por %p218, %p219
      %p222 = scmp.ne.s32.totalorder %s207, %s221
      %p223 = scmp.eq.s32.totalorder %s29, 0
      %p224 = por %p222, %p223
      %s225 = ssub.s32 %s23, %s30
      %p226 = scmp.eq.s32.totalorder %s225, 0
      %s228 = sadd.s32 %s227, 1
      %s229 = scalar_select %p226, %s227, %s228
      %p232 = pneg %p226
      %p233 = scmp.eq.s32.totalorder %s23, 1
      %p234 = por %p232, %p233
      %p235 = scmp.ne.s32.totalorder %s227, %s230
      %p236 = scmp.eq.s32.totalorder %s23, 0
      %p237 = por %p235, %p236
      %p238 = scmp.ne.s32.totalorder %s227, %s230
      %p239 = scmp.eq.s32.totalorder %s28, 1
      %p240 = por %p238, %p239
      %p241 = scmp.ne.s32.totalorder %s230, %s231
      %p242 = scmp.eq.s32.totalorder %s28, 0
      %p243 = por %p241, %p242
      %p244 = scmp.ne.s32.totalorder %s230, %s231
      %p245 = scmp.eq.s32.totalorder %s29, 1
      %p246 = por %p244, %p245
      %p248 = scmp.ne.s32.totalorder %s231, %s247
      %p249 = scmp.eq.s32.totalorder %s29, 0
      %p250 = por %p248, %p249
      %p251 = scmp.le.s32.totalorder 1, %s23
      %p252 = scmp.lt.s32.totalorder %s23, 3
      %p253 = pnand %p251, %p252
      %p254 = pneg %p253
      // Predicated region
      $region9: #{tpu_custom_call.1} parent=5 // pred_check
        _
      $region10: #{tpu_custom_call.1} parent=5 // pred_check_branch
        %256 = sbr.rel (%p253) target = $region12
      $region11: #{tpu_custom_call.1} parent=5 // pred_region
        %s257 = ssub.s32 %s23, 1
        // Predicated region
        $region13: #{tpu_custom_call.1} parent=11 // pred_check
          %p258 = pneg %p70
        $region14: #{tpu_custom_call.1} parent=11 // pred_check_branch
          %260 = sbr.rel (%p258) target = $region16
        $region15: #{tpu_custom_call.1} parent=11 // pred_region
          %s262 = ssub.s32 2048, 2048
          %263 = vsyncadd [#allocation6], %s262
          %s264 = sshll.u32 [#allocation5], 4
          %s265 = int_to_ptr.vmem [resolvable:$true] %s264
          %270 = dma.hbm_to_vmem [thread:$0]  %s1, 2048, %s265, [#allocation6], 128, 128, 8
        $region16: #{tpu_custom_call.1} parent=11 // pred_fallthru
          _
        // Predicated region
        $region17: #{tpu_custom_call.1} parent=11 // pred_check
          %p271 = pneg %p91
        $region18: #{tpu_custom_call.1} parent=11 // pred_check_branch
          %273 = sbr.rel (%p271) target = $region20
        $region19: #{tpu_custom_call.1} parent=11 // pred_region
          _
        $region20: #{tpu_custom_call.1} parent=11 // pred_fallthru
          _
        // Predicated region
        $region21: #{tpu_custom_call.1} parent=11 // pred_check
          %p274 = pneg %p112
        $region22: #{tpu_custom_call.1} parent=11 // pred_check_branch
          %276 = sbr.rel (%p274) target = $region24
        $region23: #{tpu_custom_call.1} parent=11 // pred_region
          %s278 = ssub.s32 2048, 2048
          %279 = vsyncadd [#allocation6], %s278
          %s280 = sshll.u32 [#allocation7], 4
          %s281 = int_to_ptr.vmem [resolvable:$true] %s280
          %286 = dma.hbm_to_vmem [thread:$0]  %s3, 2048, %s281, [#allocation6], 128, 128, 8
        $region24: #{tpu_custom_call.1} parent=11 // pred_fallthru
          _
        // Predicated region
        $region25: #{tpu_custom_call.1} parent=11 // pred_check
          %p287 = pneg %p133
        $region26: #{tpu_custom_call.1} parent=11 // pred_check_branch
          %289 = sbr.rel (%p287) target = $region28
        $region27: #{tpu_custom_call.1} parent=11 // pred_region
          _
        $region28: #{tpu_custom_call.1} parent=11 // pred_fallthru
          _
        // Predicated region
        $region29: #{tpu_custom_call.1} parent=11 // pred_check
          %p290 = pneg %p154
        $region30: #{tpu_custom_call.1} parent=11 // pred_check_branch
          %292 = sbr.rel (%p290) target = $region32
        $region31: #{tpu_custom_call.1} parent=11 // pred_region
          %s294 = ssub.s32 2048, 2048
          %295 = vsyncadd [#allocation9], %s294
          %s296 = sshll.u32 [#allocation8], 4
          %s297 = int_to_ptr.vmem [resolvable:$true] %s296
          %302 = dma.hbm_to_vmem [thread:$0]  %s5, 2048, %s297, [#allocation9], 128, 128, 8
        $region32: #{tpu_custom_call.1} parent=11 // pred_fallthru
          _
        // Predicated region
        $region33: #{tpu_custom_call.1} parent=11 // pred_check
          %p303 = pneg %p175
        $region34: #{tpu_custom_call.1} parent=11 // pred_check_branch
          %305 = sbr.rel (%p303) target = $region36
        $region35: #{tpu_custom_call.1} parent=11 // pred_region
          _
        $region36: #{tpu_custom_call.1} parent=11 // pred_fallthru
          _
        // Predicated region
        $region37: #{tpu_custom_call.1} parent=11 // pred_check
          %p306 = pneg %p196
        $region38: #{tpu_custom_call.1} parent=11 // pred_check_branch
          %308 = sbr.rel (%p306) target = $region40
        $region39: #{tpu_custom_call.1} parent=11 // pred_region
          %s310 = ssub.s32 2048, 2048
          %311 = vsyncadd [#allocation9], %s310
          %s312 = sshll.u32 [#allocation10], 4
          %s313 = int_to_ptr.vmem [resolvable:$true] %s312
          %318 = dma.hbm_to_vmem [thread:$0]  %s7, 2048, %s313, [#allocation9], 128, 128, 8
        $region40: #{tpu_custom_call.1} parent=11 // pred_fallthru
          _
        // Predicated region
        $region41: #{tpu_custom_call.1} parent=11 // pred_check
          %p319 = pneg %p217
        $region42: #{tpu_custom_call.1} parent=11 // pred_check_branch
          %321 = sbr.rel (%p319) target = $region44
        $region43: #{tpu_custom_call.1} parent=11 // pred_region
          _
        $region44: #{tpu_custom_call.1} parent=11 // pred_fallthru
          _
      $region12: #{tpu_custom_call.1} parent=5 // pred_fallthru
        _
      %p322 = scmp.lt.s32.totalorder %s23, 2
      // Predicated region
      $region45: #{tpu_custom_call.1} parent=5 // pred_check
        %p323 = pneg %p322
      $region46: #{tpu_custom_call.1} parent=5 // pred_check_branch
        %325 = sbr.rel (%p323) target = $region48
      $region47: #{tpu_custom_call.1} parent=5 // pred_region
        // Predicated region
        $region49: #{tpu_custom_call.1} parent=47 // pred_check
          %p326 = pneg %p43
        $region50: #{tpu_custom_call.1} parent=47 // pred_check_branch
          %328 = sbr.rel (%p326) target = $region52
        $region51: #{tpu_custom_call.1} parent=47 // pred_region
          %s329 = sand.u32 %s33, 1
          %s330 = scalar_lea.sflag [#allocation3], %s329
          %s331 = sand.u32 %s33, 1
          %s332 = smul.addr %s331, 32
          %s333 = scalar_lea.vmem [#allocation2], %s332
          %s334 = smul.u32 4, %s23
          %s336 = ssub.s32 512, 512
          %337 = vsyncadd %s330, %s336
          %s338 = smul.addr %s334, 128
          %s339 = scalar_lea.hbm %s0, %s338
          %s340 = sshll.u32 %s333, 4
          %s341 = int_to_ptr.vmem [resolvable:$true] %s340
          %346 = dma.hbm_to_vmem [thread:$0]  %s339, 512, %s341, %s330, 128, 128, 8
        $region52: #{tpu_custom_call.1} parent=47 // pred_fallthru
          _
      $region48: #{tpu_custom_call.1} parent=5 // pred_fallthru
        _
      %p347 = scmp.le.s32.totalorder 1, %s23
      %p348 = scmp.lt.s32.totalorder %s23, 3
      %p349 = pnand %p347, %p348
      %p350 = pneg %p349
      // Predicated region
      $region53: #{tpu_custom_call.1} parent=5 // pred_check
        _
      $region54: #{tpu_custom_call.1} parent=5 // pred_check_branch
        %352 = sbr.rel (%p349) target = $region56
      $region55: #{tpu_custom_call.1} parent=5 // pred_region
        %s353 = ssub.s32 %s23, 1
        %s354 = sand.u32 %s36, 1
        %s355 = scalar_lea.sflag [#allocation3], %s354
        %s356 = sand.u32 %s36, 1
        %s357 = smul.addr %s356, 32
        %s358 = scalar_lea.vmem [#allocation2], %s357
        // Predicated region
        $region57: #{tpu_custom_call.1} parent=55 // pred_check
          %p359 = pneg %p49
        $region58: #{tpu_custom_call.1} parent=55 // pred_check_branch
          %361 = sbr.rel (%p359) target = $region60
        $region59: #{tpu_custom_call.1} parent=55 // pred_region
          %362 = dma.done %s355, 512
        $region60: #{tpu_custom_call.1} parent=55 // pred_fallthru
          _
        // Predicated region
        $region61: #{tpu_custom_call.1} parent=55 // pred_check
          %p363 = pneg %p70
        $region62: #{tpu_custom_call.1} parent=55 // pred_check_branch
          %365 = sbr.rel (%p363) target = $region64
        $region63: #{tpu_custom_call.1} parent=55 // pred_region
          %366 = dma.done [#allocation6], 2048
        $region64: #{tpu_custom_call.1} parent=55 // pred_fallthru
          _
        // Predicated region
        $region65: #{tpu_custom_call.1} parent=55 // pred_check
          %p367 = pneg %p112
        $region66: #{tpu_custom_call.1} parent=55 // pred_check_branch
          %369 = sbr.rel (%p367) target = $region68
        $region67: #{tpu_custom_call.1} parent=55 // pred_region
          %370 = dma.done [#allocation6], 2048
        $region68: #{tpu_custom_call.1} parent=55 // pred_fallthru
          _
        // Predicated region
        $region69: #{tpu_custom_call.1} parent=55 // pred_check
          %p371 = pneg %p154
        $region70: #{tpu_custom_call.1} parent=55 // pred_check_branch
          %373 = sbr.rel (%p371) target = $region72
        $region71: #{tpu_custom_call.1} parent=55 // pred_region
          %374 = dma.done [#allocation9], 2048
        $region72: #{tpu_custom_call.1} parent=55 // pred_fallthru
          _
        // Predicated region
        $region73: #{tpu_custom_call.1} parent=55 // pred_check
          %p375 = pneg %p196
        $region74: #{tpu_custom_call.1} parent=55 // pred_check_branch
          %377 = sbr.rel (%p375) target = $region76
        $region75: #{tpu_custom_call.1} parent=55 // pred_region
          %378 = dma.done [#allocation9], 2048
        $region76: #{tpu_custom_call.1} parent=55 // pred_fallthru
          _
        %s379 = sand.u32 %s36, 1
        %s380 = scalar_lea.sflag [#allocation3], %s379
        %s381 = sand.u32 %s36, 1
        %s382 = smul.addr %s381, 32
        %s383 = scalar_lea.vmem [#allocation2], %s382
        %p384 = pneg %p49
        %p385 = pneg %p46
        %p386 = pneg %p70
        %p387 = pneg %p67
        %p388 = pneg %p91
        %p389 = pneg %p88
        %p390 = pneg %p112
        %p391 = pneg %p109
        %p392 = pneg %p133
        %p393 = pneg %p130
        %p394 = pneg %p154
        %p395 = pneg %p151
        %p396 = pneg %p175
        %p397 = pneg %p172
        %p398 = pneg %p196
        %p399 = pneg %p193
        %p400 = pneg %p217
        %p401 = pneg %p214
        %p402 = pneg %p243
        %p403 = pneg %p240
        %s404 = sand.u32 %s230, 1
        %s405 = scalar_lea.sflag [#allocation4], %s404
        %s406 = sand.u32 %s230, 1
        %s407 = smul.addr %s406, 32
        %s408 = scalar_lea.vmem [#allocation11], %s407
        %s409 = smul.u32 4, %s28
        %s410 = smul.u32 4, %s28
        %v411 = vld [vmem:[%s358] sm:$0xff]
        %v412 = vld [vmem:[%s358 + $0x8] sm:$0xff]
        %v413 = vld [vmem:[%s358 + $0x10] sm:$0xff]
        %v414 = vld [vmem:[%s358 + $0x18] sm:$0xff]
        %v415 = vld [vmem:[#allocation5] sm:$0xff]
        %v416 = vld [vmem:[#allocation5 + $0x8] sm:$0xff]
        %v417 = vld [vmem:[#allocation5 + $0x10] sm:$0xff]
        %v418 = vld [vmem:[#allocation5 + $0x18] sm:$0xff]
        %v419 = vld [vmem:[#allocation5 + $0x20] sm:$0xff]
        %v420 = vld [vmem:[#allocation5 + $0x28] sm:$0xff]
        %v421 = vld [vmem:[#allocation5 + $0x30] sm:$0xff]
        %v422 = vld [vmem:[#allocation5 + $0x38] sm:$0xff]
        %v423 = vld [vmem:[#allocation5 + $0x40] sm:$0xff]
        %v424 = vld [vmem:[#allocation5 + $0x48] sm:$0xff]
        %v425 = vld [vmem:[#allocation5 + $0x50] sm:$0xff]
        %v426 = vld [vmem:[#allocation5 + $0x58] sm:$0xff]
        %v427 = vld [vmem:[#allocation5 + $0x60] sm:$0xff]
        %v428 = vld [vmem:[#allocation5 + $0x68] sm:$0xff]
        %v429 = vld [vmem:[#allocation5 + $0x70] sm:$0xff]
        %v430 = vld [vmem:[#allocation5 + $0x78] sm:$0xff]
        %v431 = vld [vmem:[%s2] sm:$0x1]
        %v433 = vlaneseq
        %v434 = vshrl.u32 %v433, 7
        %v435 = vsub.s32 0, %v434
        %v436 = vrot.slane %v431, %v435
        %438 = vmatprep.subr.mxu0 0.0
        %439 = vmatpush1.msra.mxu0 %v415
        %440 = vmatprep.subr.mxu0 0.0
        %441 = vmatpush1.msra.mxu0 %v416
        %442 = vmatprep.subr.mxu0 0.0
        %443 = vmatpush1.msra.mxu0 %v417
        %444 = vmatprep.subr.mxu0 0.0
        %445 = vmatpush1.msra.mxu0 %v418
        %446 = vmatprep.subr.mxu0 0.0
        %447 = vmatpush1.msra.mxu0 %v419
        %448 = vmatprep.subr.mxu0 0.0
        %449 = vmatpush1.msra.mxu0 %v420
        %450 = vmatprep.subr.mxu0 0.0
        %451 = vmatpush1.msra.mxu0 %v421
        %452 = vmatprep.subr.mxu0 0.0
        %453 = vmatpush1.msra.mxu0 %v422
        %454 = vmatprep.subr.mxu0 0.0
        %455 = vmatpush1.msra.mxu0 %v423
        %456 = vmatprep.subr.mxu0 0.0
        %457 = vmatpush1.msra.mxu0 %v424
        %458 = vmatprep.subr.mxu0 0.0
        %459 = vmatpush1.msra.mxu0 %v425
        %460 = vmatprep.subr.mxu0 0.0
        %461 = vmatpush1.msra.mxu0 %v426
        %462 = vmatprep.subr.mxu0 0.0
        %463 = vmatpush1.msra.mxu0 %v427
        %464 = vmatprep.subr.mxu0 0.0
        %465 = vmatpush1.msra.mxu0 %v428
        %466 = vmatprep.subr.mxu0 0.0
        %467 = vmatpush1.msra.mxu0 %v429
        %468 = vmatprep.subr.mxu0 0.0
        %469 = vmatpush1.msra.mxu0 %v430
        %470 = vmatprep.subr.mxu0 0.0
        %471 = vmatpush1.msra.mxu0 0.0
        %472 = vmatprep.subr.mxu0 0.0
        %473 = vmatpush1.msra.mxu0 0.0
        %474 = vmatprep.subr.mxu0 0.0
        %475 = vmatpush1.msra.mxu0 0.0
        %476 = vmatprep.subr.mxu0 0.0
        %477 = vmatpush1.msra.mxu0 0.0
        %478 = vmatprep.subr.mxu0 0.0
        %479 = vmatpush1.msra.mxu0 0.0
        %480 = vmatprep.subr.mxu0 0.0
        %481 = vmatpush1.msra.mxu0 0.0
        %482 = vmatprep.subr.mxu0 0.0
        %483 = vmatpush1.msra.mxu0 0.0
        %484 = vmatprep.subr.mxu0 0.0
        %485 = vmatpush1.msra.mxu0 0.0
        %486 = vmatprep.subr.mxu0 0.0
        %487 = vmatpush1.msra.mxu0 0.0
        %488 = vmatprep.subr.mxu0 0.0
        %489 = vmatpush1.msra.mxu0 0.0
        %490 = vmatprep.subr.mxu0 0.0
        %491 = vmatpush1.msra.mxu0 0.0
        %492 = vmatprep.subr.mxu0 0.0
        %493 = vmatpush1.msra.mxu0 0.0
        %494 = vmatprep.subr.mxu0 0.0
        %495 = vmatpush1.msra.mxu0 0.0
        %496 = vmatprep.subr.mxu0 0.0
        %497 = vmatpush1.msra.mxu0 0.0
        %498 = vmatprep.subr.mxu0 0.0
        %499 = vmatpush1.msra.mxu0 0.0
        %500 = vmatprep.subr.mxu0 0.0
        %501 = vmatpush1.msra.mxu0 0.0
        %502 = vmatprep.mubr.f32.mxu0 0.0
        %503 = vmatmul.mubr.f32.gmra.mrb[0].mxu0 %v411
        %v504 = vpop.f32.mrb[0].mxu0
        %v505 = vadd.f32 %v436, %v504
        %v506 = vpop.f32.mrb[0].mxu0
        %507 = vmatprep.mubr.f32.mxu0 0.0
        %508 = vmatmul.mubr.f32.gmra.mrb[0].mxu0 %v412
        %v509 = vpop.f32.mrb[0].mxu0
        %v510 = vadd.f32 %v436, %v509
        %v511 = vpop.f32.mrb[0].mxu0
        %512 = vmatprep.mubr.f32.mxu0 0.0
        %513 = vmatmul.mubr.f32.gmra.mrb[0].mxu0 %v413
        %v514 = vpop.f32.mrb[0].mxu0
        %v515 = vadd.f32 %v436, %v514
        %v516 = vpop.f32.mrb[0].mxu0
        %517 = vmatprep.mubr.f32.mxu0 0.0
        %518 = vmatmul.mubr.f32.gmra.mrb[0].mxu0 %v414
        %v519 = vpop.f32.mrb[0].mxu0
        %v520 = vadd.f32 %v436, %v519
        %v521 = vpop.f32.mrb[0].mxu0
        %522 = vdwg.mxu0
        %v523 = vmax.f32 %v505, 0.0
        %v524 = vmax.f32 %v510, 0.0
        %v525 = vmax.f32 %v515, 0.0
        %v526 = vmax.f32 %v520, 0.0
        %v527 = vld [vmem:[#allocation7] sm:$0xff]
        %v528 = vld [vmem:[#allocation7 + $0x8] sm:$0xff]
        %v529 = vld [vmem:[#allocation7 + $0x10] sm:$0xff]
        %v530 = vld [vmem:[#allocation7 + $0x18] sm:$0xff]
        %v531 = vld [vmem:[#allocation7 + $0x20] sm:$0xff]
        %v532 = vld [vmem:[#allocation7 + $0x28] sm:$0xff]
        %v533 = vld [vmem:[#allocation7 + $0x30] sm:$0xff]
        %v534 = vld [vmem:[#allocation7 + $0x38] sm:$0xff]
        %v535 = vld [vmem:[#allocation7 + $0x40] sm:$0xff]
        %v536 = vld [vmem:[#allocation7 + $0x48] sm:$0xff]
        %v537 = vld [vmem:[#allocation7 + $0x50] sm:$0xff]
        %v538 = vld [vmem:[#allocation7 + $0x58] sm:$0xff]
        %v539 = vld [vmem:[#allocation7 + $0x60] sm:$0xff]
        %v540 = vld [vmem:[#allocation7 + $0x68] sm:$0xff]
        %v541 = vld [vmem:[#allocation7 + $0x70] sm:$0xff]
        %v542 = vld [vmem:[#allocation7 + $0x78] sm:$0xff]
        %v543 = vld [vmem:[%s4] sm:$0x1]
        %v545 = vlaneseq
        %v546 = vshrl.u32 %v545, 7
        %v547 = vsub.s32 0, %v546
        %v548 = vrot.slane %v543, %v547
        %550 = vmatprep.subr.mxu0 0.0
        %551 = vmatpush1.msra.mxu0 %v527
        %552 = vmatprep.subr.mxu0 0.0
        %553 = vmatpush1.msra.mxu0 %v528
        %554 = vmatprep.subr.mxu0 0.0
        %555 = vmatpush1.msra.mxu0 %v529
        %556 = vmatprep.subr.mxu0 0.0
        %557 = vmatpush1.msra.mxu0 %v530
        %558 = vmatprep.subr.mxu0 0.0
        %559 = vmatpush1.msra.mxu0 %v531
        %560 = vmatprep.subr.mxu0 0.0
        %561 = vmatpush1.msra.mxu0 %v532
        %562 = vmatprep.subr.mxu0 0.0
        %563 = vmatpush1.msra.mxu0 %v533
        %564 = vmatprep.subr.mxu0 0.0
        %565 = vmatpush1.msra.mxu0 %v534
        %566 = vmatprep.subr.mxu0 0.0
        %567 = vmatpush1.msra.mxu0 %v535
        %568 = vmatprep.subr.mxu0 0.0
        %569 = vmatpush1.msra.mxu0 %v536
        %570 = vmatprep.subr.mxu0 0.0
        %571 = vmatpush1.msra.mxu0 %v537
        %572 = vmatprep.subr.mxu0 0.0
        %573 = vmatpush1.msra.mxu0 %v538
        %574 = vmatprep.subr.mxu0 0.0
        %575 = vmatpush1.msra.mxu0 %v539
        %576 = vmatprep.subr.mxu0 0.0
        %577 = vmatpush1.msra.mxu0 %v540
        %578 = vmatprep.subr.mxu0 0.0
        %579 = vmatpush1.msra.mxu0 %v541
        %580 = vmatprep.subr.mxu0 0.0
        %581 = vmatpush1.msra.mxu0 %v542
        %582 = vmatprep.subr.mxu0 0.0
        %583 = vmatpush1.msra.mxu0 0.0
        %584 = vmatprep.subr.mxu0 0.0
        %585 = vmatpush1.msra.mxu0 0.0
        %586 = vmatprep.subr.mxu0 0.0
        %587 = vmatpush1.msra.mxu0 0.0
        %588 = vmatprep.subr.mxu0 0.0
        %589 = vmatpush1.msra.mxu0 0.0
        %590 = vmatprep.subr.mxu0 0.0
        %591 = vmatpush1.msra.mxu0 0.0
        %592 = vmatprep.subr.mxu0 0.0
        %593 = vmatpush1.msra.mxu0 0.0
        %594 = vmatprep.subr.mxu0 0.0
        %595 = vmatpush1.msra.mxu0 0.0
        %596 = vmatprep.subr.mxu0 0.0
        %597 = vmatpush1.msra.mxu0 0.0
        %598 = vmatprep.subr.mxu0 0.0
        %599 = vmatpush1.msra.mxu0 0.0
        %600 = vmatprep.subr.mxu0 0.0
        %601 = vmatpush1.msra.mxu0 0.0
        %602 = vmatprep.subr.mxu0 0.0
        %603 = vmatpush1.msra.mxu0 0.0
        %604 = vmatprep.subr.mxu0 0.0
        %605 = vmatpush1.msra.mxu0 0.0
        %606 = vmatprep.subr.mxu0 0.0
        %607 = vmatpush1.msra.mxu0 0.0
        %608 = vmatprep.subr.mxu0 0.0
        %609 = vmatpush1.msra.mxu0 0.0
        %610 = vmatprep.subr.mxu0 0.0
        %611 = vmatpush1.msra.mxu0 0.0
        %612 = vmatprep.subr.mxu0 0.0
        %613 = vmatpush1.msra.mxu0 0.0
        %614 = vmatprep.mubr.f32.mxu0 0.0
        %615 = vmatmul.mubr.f32.gmra.mrb[0].mxu0 %v523
        %v616 = vpop.f32.mrb[0].mxu0
        %v617 = vadd.f32 %v548, %v616
        %v618 = vpop.f32.mrb[0].mxu0
        %619 = vmatprep.mubr.f32.mxu0 0.0
        %620 = vmatmul.mubr.f32.gmra.mrb[0].mxu0 %v524
        %v621 = vpop.f32.mrb[0].mxu0
        %v622 = vadd.f32 %v548, %v621
        %v623 = vpop.f32.mrb[0].mxu0
        %624 = vmatprep.mubr.f32.mxu0 0.0
        %625 = vmatmul.mubr.f32.gmra.mrb[0].mxu0 %v525
        %v626 = vpop.f32.mrb[0].mxu0
        %v627 = vadd.f32 %v548, %v626
        %v628 = vpop.f32.mrb[0].mxu0
        %629 = vmatprep.mubr.f32.mxu0 0.0
        %630 = vmatmul.mubr.f32.gmra.mrb[0].mxu0 %v526
        %v631 = vpop.f32.mrb[0].mxu0
        %v632 = vadd.f32 %v548, %v631
        %v633 = vpop.f32.mrb[0].mxu0
        %634 = vdwg.mxu0
        %v635 = vmax.f32 %v617, 0.0
        %v636 = vmax.f32 %v622, 0.0
        %v637 = vmax.f32 %v627, 0.0
        %v638 = vmax.f32 %v632, 0.0
        %v639 = vld [vmem:[#allocation8] sm:$0xff]
        %v640 = vld [vmem:[#allocation8 + $0x8] sm:$0xff]
        %v641 = vld [vmem:[#allocation8 + $0x10] sm:$0xff]
        %v642 = vld [vmem:[#allocation8 + $0x18] sm:$0xff]
        %v643 = vld [vmem:[#allocation8 + $0x20] sm:$0xff]
        %v644 = vld [vmem:[#allocation8 + $0x28] sm:$0xff]
        %v645 = vld [vmem:[#allocation8 + $0x30] sm:$0xff]
        %v646 = vld [vmem:[#allocation8 + $0x38] sm:$0xff]
        %v647 = vld [vmem:[#allocation8 + $0x40] sm:$0xff]
        %v648 = vld [vmem:[#allocation8 + $0x48] sm:$0xff]
        %v649 = vld [vmem:[#allocation8 + $0x50] sm:$0xff]
        %v650 = vld [vmem:[#allocation8 + $0x58] sm:$0xff]
        %v651 = vld [vmem:[#allocation8 + $0x60] sm:$0xff]
        %v652 = vld [vmem:[#allocation8 + $0x68] sm:$0xff]
        %v653 = vld [vmem:[#allocation8 + $0x70] sm:$0xff]
        %v654 = vld [vmem:[#allocation8 + $0x78] sm:$0xff]
        %v655 = vld [vmem:[%s6] sm:$0x1]
        %v657 = vlaneseq
        %v658 = vshrl.u32 %v657, 7
        %v659 = vsub.s32 0, %v658
        %v660 = vrot.slane %v655, %v659
        %662 = vmatprep.subr.mxu0 0.0
        %663 = vmatpush1.msra.mxu0 %v639
        %664 = vmatprep.subr.mxu0 0.0
        %665 = vmatpush1.msra.mxu0 %v640
        %666 = vmatprep.subr.mxu0 0.0
        %667 = vmatpush1.msra.mxu0 %v641
        %668 = vmatprep.subr.mxu0 0.0
        %669 = vmatpush1.msra.mxu0 %v642
        %670 = vmatprep.subr.mxu0 0.0
        %671 = vmatpush1.msra.mxu0 %v643
        %672 = vmatprep.subr.mxu0 0.0
        %673 = vmatpush1.msra.mxu0 %v644
        %674 = vmatprep.subr.mxu0 0.0
        %675 = vmatpush1.msra.mxu0 %v645
        %676 = vmatprep.subr.mxu0 0.0
        %677 = vmatpush1.msra.mxu0 %v646
        %678 = vmatprep.subr.mxu0 0.0
        %679 = vmatpush1.msra.mxu0 %v647
        %680 = vmatprep.subr.mxu0 0.0
        %681 = vmatpush1.msra.mxu0 %v648
        %682 = vmatprep.subr.mxu0 0.0
        %683 = vmatpush1.msra.mxu0 %v649
        %684 = vmatprep.subr.mxu0 0.0
        %685 = vmatpush1.msra.mxu0 %v650
        %686 = vmatprep.subr.mxu0 0.0
        %687 = vmatpush1.msra.mxu0 %v651
        %688 = vmatprep.subr.mxu0 0.0
        %689 = vmatpush1.msra.mxu0 %v652
        %690 = vmatprep.subr.mxu0 0.0
        %691 = vmatpush1.msra.mxu0 %v653
        %692 = vmatprep.subr.mxu0 0.0
        %693 = vmatpush1.msra.mxu0 %v654
        %694 = vmatprep.subr.mxu0 0.0
        %695 = vmatpush1.msra.mxu0 0.0
        %696 = vmatprep.subr.mxu0 0.0
        %697 = vmatpush1.msra.mxu0 0.0
        %698 = vmatprep.subr.mxu0 0.0
        %699 = vmatpush1.msra.mxu0 0.0
        %700 = vmatprep.subr.mxu0 0.0
        %701 = vmatpush1.msra.mxu0 0.0
        %702 = vmatprep.subr.mxu0 0.0
        %703 = vmatpush1.msra.mxu0 0.0
        %704 = vmatprep.subr.mxu0 0.0
        %705 = vmatpush1.msra.mxu0 0.0
        %706 = vmatprep.subr.mxu0 0.0
        %707 = vmatpush1.msra.mxu0 0.0
        %708 = vmatprep.subr.mxu0 0.0
        %709 = vmatpush1.msra.mxu0 0.0
        %710 = vmatprep.subr.mxu0 0.0
        %711 = vmatpush1.msra.mxu0 0.0
        %712 = vmatprep.subr.mxu0 0.0
        %713 = vmatpush1.msra.mxu0 0.0
        %714 = vmatprep.subr.mxu0 0.0
        %715 = vmatpush1.msra.mxu0 0.0
        %716 = vmatprep.subr.mxu0 0.0
        %717 = vmatpush1.msra.mxu0 0.0
        %718 = vmatprep.subr.mxu0 0.0
        %719 = vmatpush1.msra.mxu0 0.0
        %720 = vmatprep.subr.mxu0 0.0
        %721 = vmatpush1.msra.mxu0 0.0
        %722 = vmatprep.subr.mxu0 0.0
        %723 = vmatpush1.msra.mxu0 0.0
        %724 = vmatprep.subr.mxu0 0.0
        %725 = vmatpush1.msra.mxu0 0.0
        %726 = vmatprep.mubr.f32.mxu0 0.0
        %727 = vmatmul.mubr.f32.gmra.mrb[0].mxu0 %v635
        %v728 = vpop.f32.mrb[0].mxu0
        %v729 = vadd.f32 %v660, %v728
        %v730 = vpop.f32.mrb[0].mxu0
        %731 = vmatprep.mubr.f32.mxu0 0.0
        %732 = vmatmul.mubr.f32.gmra.mrb[0].mxu0 %v636
        %v733 = vpop.f32.mrb[0].mxu0
        %v734 = vadd.f32 %v660, %v733
        %v735 = vpop.f32.mrb[0].mxu0
        %736 = vmatprep.mubr.f32.mxu0 0.0
        %737 = vmatmul.mubr.f32.gmra.mrb[0].mxu0 %v637
        %v738 = vpop.f32.mrb[0].mxu0
        %v739 = vadd.f32 %v660, %v738
        %v740 = vpop.f32.mrb[0].mxu0
        %741 = vmatprep.mubr.f32.mxu0 0.0
        %742 = vmatmul.mubr.f32.gmra.mrb[0].mxu0 %v638
        %v743 = vpop.f32.mrb[0].mxu0
        %v744 = vadd.f32 %v660, %v743
        %v745 = vpop.f32.mrb[0].mxu0
        %746 = vdwg.mxu0
        %v747 = vmax.f32 %v729, 0.0
        %v748 = vmax.f32 %v734, 0.0
        %v749 = vmax.f32 %v739, 0.0
        %v750 = vmax.f32 %v744, 0.0
        %v751 = vld [vmem:[#allocation10] sm:$0xff]
        %v752 = vld [vmem:[#allocation10 + $0x8] sm:$0xff]
        %v753 = vld [vmem:[#allocation10 + $0x10] sm:$0xff]
        %v754 = vld [vmem:[#allocation10 + $0x18] sm:$0xff]
        %v755 = vld [vmem:[#allocation10 + $0x20] sm:$0xff]
        %v756 = vld [vmem:[#allocation10 + $0x28] sm:$0xff]
        %v757 = vld [vmem:[#allocation10 + $0x30] sm:$0xff]
        %v758 = vld [vmem:[#allocation10 + $0x38] sm:$0xff]
        %v759 = vld [vmem:[#allocation10 + $0x40] sm:$0xff]
        %v760 = vld [vmem:[#allocation10 + $0x48] sm:$0xff]
        %v761 = vld [vmem:[#allocation10 + $0x50] sm:$0xff]
        %v762 = vld [vmem:[#allocation10 + $0x58] sm:$0xff]
        %v763 = vld [vmem:[#allocation10 + $0x60] sm:$0xff]
        %v764 = vld [vmem:[#allocation10 + $0x68] sm:$0xff]
        %v765 = vld [vmem:[#allocation10 + $0x70] sm:$0xff]
        %v766 = vld [vmem:[#allocation10 + $0x78] sm:$0xff]
        %v767 = vld [vmem:[%s8] sm:$0x1]
        %v769 = vlaneseq
        %v770 = vshrl.u32 %v769, 7
        %v771 = vsub.s32 0, %v770
        %v772 = vrot.slane %v767, %v771
        %774 = vmatprep.subr.mxu0 0.0
        %775 = vmatpush1.msra.mxu0 %v751
        %776 = vmatprep.subr.mxu0 0.0
        %777 = vmatpush1.msra.mxu0 %v752
        %778 = vmatprep.subr.mxu0 0.0
        %779 = vmatpush1.msra.mxu0 %v753
        %780 = vmatprep.subr.mxu0 0.0
        %781 = vmatpush1.msra.mxu0 %v754
        %782 = vmatprep.subr.mxu0 0.0
        %783 = vmatpush1.msra.mxu0 %v755
        %784 = vmatprep.subr.mxu0 0.0
        %785 = vmatpush1.msra.mxu0 %v756
        %786 = vmatprep.subr.mxu0 0.0
        %787 = vmatpush1.msra.mxu0 %v757
        %788 = vmatprep.subr.mxu0 0.0
        %789 = vmatpush1.msra.mxu0 %v758
        %790 = vmatprep.subr.mxu0 0.0
        %791 = vmatpush1.msra.mxu0 %v759
        %792 = vmatprep.subr.mxu0 0.0
        %793 = vmatpush1.msra.mxu0 %v760
        %794 = vmatprep.subr.mxu0 0.0
        %795 = vmatpush1.msra.mxu0 %v761
        %796 = vmatprep.subr.mxu0 0.0
        %797 = vmatpush1.msra.mxu0 %v762
        %798 = vmatprep.subr.mxu0 0.0
        %799 = vmatpush1.msra.mxu0 %v763
        %800 = vmatprep.subr.mxu0 0.0
        %801 = vmatpush1.msra.mxu0 %v764
        %802 = vmatprep.subr.mxu0 0.0
        %803 = vmatpush1.msra.mxu0 %v765
        %804 = vmatprep.subr.mxu0 0.0
        %805 = vmatpush1.msra.mxu0 %v766
        %806 = vmatprep.subr.mxu0 0.0
        %807 = vmatpush1.msra.mxu0 0.0
        %808 = vmatprep.subr.mxu0 0.0
        %809 = vmatpush1.msra.mxu0 0.0
        %810 = vmatprep.subr.mxu0 0.0
        %811 = vmatpush1.msra.mxu0 0.0
        %812 = vmatprep.subr.mxu0 0.0
        %813 = vmatpush1.msra.mxu0 0.0
        %814 = vmatprep.subr.mxu0 0.0
        %815 = vmatpush1.msra.mxu0 0.0
        %816 = vmatprep.subr.mxu0 0.0
        %817 = vmatpush1.msra.mxu0 0.0
        %818 = vmatprep.subr.mxu0 0.0
        %819 = vmatpush1.msra.mxu0 0.0
        %820 = vmatprep.subr.mxu0 0.0
        %821 = vmatpush1.msra.mxu0 0.0
        %822 = vmatprep.subr.mxu0 0.0
        %823 = vmatpush1.msra.mxu0 0.0
        %824 = vmatprep.subr.mxu0 0.0
        %825 = vmatpush1.msra.mxu0 0.0
        %826 = vmatprep.subr.mxu0 0.0
        %827 = vmatpush1.msra.mxu0 0.0
        %828 = vmatprep.subr.mxu0 0.0
        %829 = vmatpush1.msra.mxu0 0.0
        %830 = vmatprep.subr.mxu0 0.0
        %831 = vmatpush1.msra.mxu0 0.0
        %832 = vmatprep.subr.mxu0 0.0
        %833 = vmatpush1.msra.mxu0 0.0
        %834 = vmatprep.subr.mxu0 0.0
        %835 = vmatpush1.msra.mxu0 0.0
        %836 = vmatprep.subr.mxu0 0.0
        %837 = vmatpush1.msra.mxu0 0.0
        %838 = vmatprep.mubr.f32.mxu0 0.0
        %839 = vmatmul.mubr.f32.gmra.mrb[0].mxu0 %v747
        %v840 = vpop.f32.mrb[0].mxu0
        %v841 = vadd.f32 %v772, %v840
        %v842 = vpop.f32.mrb[0].mxu0
        %843 = vmatprep.mubr.f32.mxu0 0.0
        %844 = vmatmul.mubr.f32.gmra.mrb[0].mxu0 %v748
        %v845 = vpop.f32.mrb[0].mxu0
        %v846 = vadd.f32 %v772, %v845
        %v847 = vpop.f32.mrb[0].mxu0
        %848 = vmatprep.mubr.f32.mxu0 0.0
        %849 = vmatmul.mubr.f32.gmra.mrb[0].mxu0 %v749
        %v850 = vpop.f32.mrb[0].mxu0
        %v851 = vadd.f32 %v772, %v850
        %v852 = vpop.f32.mrb[0].mxu0
        %853 = vmatprep.mubr.f32.mxu0 0.0
        %854 = vmatmul.mubr.f32.gmra.mrb[0].mxu0 %v750
        %v855 = vpop.f32.mrb[0].mxu0
        %v856 = vadd.f32 %v772, %v855
        %v857 = vpop.f32.mrb[0].mxu0
        %858 = vdwg.mxu0
        %v859 = vxor.u32 %v841, 2147483648
        %v860 = vxor.u32 %v846, 2147483648
        %v861 = vxor.u32 %v851, 2147483648
        %v862 = vxor.u32 %v856, 2147483648
        %v863 = vmul.f32 %v859, 1.442695
        %v864 = vpow.pop %v863
        %v865 = vmul.f32 %v860, 1.442695
        %v866 = vpow.pop %v865
        %v867 = vmul.f32 %v861, 1.442695
        %v868 = vpow.pop %v867
        %v869 = vmul.f32 %v862, 1.442695
        %v870 = vpow.pop %v869
        %v871 = vadd.f32 %v864, 1.0
        %v872 = vadd.f32 %v866, 1.0
        %v873 = vadd.f32 %v868, 1.0
        %v874 = vadd.f32 %v870, 1.0
        %v875 = vrcp.pop %v871
        %v876 = vmul.f32 1.0, %v875
        %v877 = vrcp.pop %v872
        %v878 = vmul.f32 1.0, %v877
        %v879 = vrcp.pop %v873
        %v880 = vmul.f32 1.0, %v879
        %v881 = vrcp.pop %v874
        %v882 = vmul.f32 1.0, %v881
        %883 = vst [vmem:[%s408] sm:$0xff] %v876
        %884 = vst [vmem:[%s408 + $0x8] sm:$0xff] %v878
        %885 = vst [vmem:[%s408 + $0x10] sm:$0xff] %v880
        %886 = vst [vmem:[%s408 + $0x18] sm:$0xff] %v882
        %s887 = sand.u32 %s230, 1
        %s888 = scalar_lea.sflag [#allocation4], %s887
        %s889 = sand.u32 %s230, 1
        %s890 = smul.addr %s889, 32
        %s891 = scalar_lea.vmem [#allocation11], %s890
        // Predicated region
        $region77: #{tpu_custom_call.1} parent=55 // pred_check
          %p892 = pneg %p240
        $region78: #{tpu_custom_call.1} parent=55 // pred_check_branch
          %894 = sbr.rel (%p892) target = $region80
        $region79: #{tpu_custom_call.1} parent=55 // pred_region
          %s895 = smul.u32 4, %s28
          %s897 = ssub.s32 512, 512
          %898 = vsyncadd %s888, %s897
          %s899 = smul.addr %s895, 128
          %s900 = scalar_lea.hbm %s9, %s899
          %s901 = sshll.u32 %s891, 4
          %s902 = int_to_ptr.vmem [resolvable:$true] %s901
          %907 = dma.vmem_to_hbm [thread:$0]  %s902, 512, %s900, %s888, 128, 128, 8
        $region80: #{tpu_custom_call.1} parent=55 // pred_fallthru
          _
      $region56: #{tpu_custom_call.1} parent=5 // pred_fallthru
        _
      %p908 = scmp.le.s32.totalorder 2, %s23
      // Predicated region
      $region81: #{tpu_custom_call.1} parent=5 // pred_check
        %p909 = pneg %p908
      $region82: #{tpu_custom_call.1} parent=5 // pred_check_branch
        %911 = sbr.rel (%p909) target = $region84
      $region83: #{tpu_custom_call.1} parent=5 // pred_region
        %s912 = ssub.s32 %s23, 2
        // Predicated region
        $region85: #{tpu_custom_call.1} parent=83 // pred_check
          %p913 = pneg %p246
        $region86: #{tpu_custom_call.1} parent=83 // pred_check_branch
          %915 = sbr.rel (%p913) target = $region88
        $region87: #{tpu_custom_call.1} parent=83 // pred_region
          %s916 = sand.u32 %s231, 1
          %s917 = scalar_lea.sflag [#allocation4], %s916
          %s918 = sand.u32 %s231, 1
          %s919 = smul.addr %s918, 32
          %s920 = scalar_lea.vmem [#allocation11], %s919
          %921 = dma.done %s917, 512
        $region88: #{tpu_custom_call.1} parent=83 // pred_fallthru
          _
      $region84: #{tpu_custom_call.1} parent=5 // pred_fallthru
        _
    $region6: #{tpu_custom_call.1} parent=1 // loop_footer
      %s27 = sadd.s32 1, %s23
    $region7: #{tpu_custom_call.1} parent=1 // loop_footer_branch
      %22 = sbr.rel target = $region3
    $region8: #{tpu_custom_call.1} parent=1 // loop_exit
      _
    %922 = vsyncpa [#allocation3], 1
    %s923 = scalar_lea.sflag [#allocation3], 1
    %924 = vsyncpa %s923, 1
    %925 = vsyncpa [#allocation6], 1
    %926 = vsyncpa [#allocation9], 1
    %927 = vsyncpa [#allocation4], 1
    %s928 = scalar_lea.sflag [#allocation4], 1
    %929 = vsyncpa %s928, 1

</llo_original>
